<compile_context>
chip_gen: v7x
topology: tpu7x:2x2x1
jax: 0.10.0
libtpu: 0.0.40
codegen_flags: <defaults>
</compile_context>

<pallas_src>
import functools

import jax
import jax.numpy as jnp
from jax.experimental import pallas as pl
from jax.experimental.pallas import tpu as pltpu


def _round_up(n, m):
    return ((n + m - 1) // m) * m


def _round_down(n, m):
    return (n // m) * m


def _regr_head_kernel(x_ref, w_ref, b_ref, o_ref, acc_ref, *, inv_s, y_range, fold):
    # x_ref:   (B_tile, S_tile, D_eff)  streamed over the S grid axis
    # w_ref:   (D, O), b_ref: (1, O)    resident across the S axis
    # o_ref:   (B_tile, O)              written once, on the last S step
    # acc_ref: (B_tile, D_eff) f32      running sum over the sequence
    s = pl.program_id(1)

    @pl.when(s == 0)
    def _init():
        acc_ref[...] = jnp.zeros_like(acc_ref)

    # Widening accumulate: keep the DMA'd tile in its HBM dtype, sum in f32.
    acc_ref[...] += jnp.sum(x_ref[...], axis=1, dtype=jnp.float32)

    @pl.when(s == pl.num_programs(1) - 1)
    def _finalize():
        acc = acc_ref[...]                                  # (B_tile, D_eff) f32
        if fold > 1:
            bt, de = acc.shape
            acc = jnp.sum(acc.reshape(bt, fold, de // fold), axis=1)  # (B_tile, D)
        x_mean = acc * inv_s                                # (B_tile, D) f32
        y = jnp.dot(x_mean, w_ref[...].astype(jnp.float32),
                    preferred_element_type=jnp.float32)     # (B_tile, O)
        y = y + b_ref[...].astype(jnp.float32)
        if y_range is not None:
            lo, hi = y_range
            y = jax.nn.sigmoid(y) * (hi - lo) + lo
        o_ref[...] = y.astype(o_ref.dtype)


def regr_head(x, weight, bias, y_range=None):
    """Pallas TPU implementation of RegrHead.forward.

    Args:
      x:      [B, S, D] float array.
      weight: [O, D] float array (PyTorch nn.Linear convention).
      bias:   [O] float array.
      y_range: optional (lo, hi) tuple for SigmoidRange.

    Returns:
      [B, O] array with x.dtype.
    """
    B, S, D = x.shape
    O = weight.shape[0]
    dtype = x.dtype
    itemsize = jnp.dtype(dtype).itemsize

    # ---- generation-aware VMEM budget --------------------------------------
    try:
        vmem_cap = int(pltpu.get_tpu_info().vmem_capacity_bytes)
    except Exception:  # pragma: no cover - conservative fallback
        vmem_cap = 64 * 1024 * 1024
    # Scoped limit: 32 MiB on v7x (64 MiB physical), 64 MiB on v5e/v6e (128 MiB).
    vmem_limit = min(vmem_cap // 2, 64 * 1024 * 1024)
    # Per x buffer (double-buffered by the pipeline): ~10-12 MiB, leaves ample
    # headroom for the resident weight/bias/output blocks + accumulator.
    x_buf_budget = min(vmem_limit // 3, 12 * 1024 * 1024)

    # ---- dtype-aware sublane alignment (rows per packed vreg) --------------
    s_align = max(8, 32 // itemsize)          # 8 f32 / 16 bf16 / 32 int8-fp8
    b_align = s_align

    # ---- lane-dense folding for small D ------------------------------------
    fold = 1
    if D < 128 and 128 % D == 0:
        fold = 128 // D                       # k sequence steps folded into lanes
    D_eff = D * fold

    # ---- batch tile ---------------------------------------------------------
    B_pad = _round_up(B, b_align)
    B_tile = min(64, B_pad)
    if B_pad >= 2 * b_align:
        # Keep >= 2 blocks along the parallel batch axis (v7x dual TC).
        B_tile = min(B_tile, max(b_align, _round_down(B_pad // 2, b_align)))
    # Enforce that even the minimal S tile fits the byte budget; shrink B_tile
    # rather than letting the buffer blow past the budget.
    while B_tile > b_align and B_tile * s_align * D_eff * itemsize > x_buf_budget:
        B_tile = max(b_align, _round_down(B_tile // 2, b_align))
    B_pad = _round_up(B, B_tile)

    # ---- sequence tile (primary knob, maximized within the budget) ----------
    S_fold = -(-S // fold)                    # ceil(S / fold)
    max_s = x_buf_budget // max(1, B_tile * D_eff * itemsize)
    max_s = max(s_align, _round_down(max_s, s_align))
    S_tile = min(max_s, _round_up(S_fold, s_align))
    S_fold_pad = _round_up(S_fold, S_tile)
    S_pad = S_fold_pad * fold

    # ---- pad + reshape in the wrapper (zero padding leaves the sum exact) ---
    if B_pad != B or S_pad != S:
        x = jnp.pad(x, ((0, B_pad - B), (0, S_pad - S), (0, 0)))
    x = x.reshape(B_pad, S_fold_pad, D_eff)   # contiguous view; lane-dense when fold>1

    # One-time wrapper transpose so the kernel does a plain (B,D)@(D,O) matmul.
    w_t = jnp.transpose(weight, (1, 0))       # (D, O)
    b2 = bias.reshape(1, O)                   # (1, O)

    grid = (B_pad // B_tile, S_fold_pad // S_tile)

    cost = pl.CostEstimate(
        flops=B * S * D + 2 * B * D * O,
        transcendentals=(B * O) if y_range is not None else 0,
        bytes_accessed=(B * S * D + D * O + O + B * O) * itemsize,
    )

    kernel = functools.partial(_regr_head_kernel,
                               inv_s=1.0 / float(S),
                               y_range=y_range,
                               fold=fold)

    out = pl.pallas_call(
        kernel,
        out_shape=jax.ShapeDtypeStruct((B_pad, O), dtype),
        grid_spec=pltpu.PrefetchScalarGridSpec(
            num_scalar_prefetch=0,
            grid=grid,
            in_specs=[
                # x streamed over (batch tile, folded-sequence tile).
                pl.BlockSpec((B_tile, S_tile, D_eff), lambda b, s: (b, s, 0)),
                # weight / bias: constant index map -> resident across S.
                pl.BlockSpec((D, O), lambda b, s: (0, 0)),
                pl.BlockSpec((1, O), lambda b, s: (0, 0)),
            ],
            out_specs=pl.BlockSpec((B_tile, O), lambda b, s: (b, 0)),
            scratch_shapes=[pltpu.VMEM((B_tile, D_eff), jnp.float32)],
        ),
        compiler_params=pltpu.CompilerParams(
            dimension_semantics=("parallel", "arbitrary"),
            vmem_limit_bytes=vmem_limit,
        ),
        cost_estimate=cost,
    )(x, w_t, b2)

    return out[:B] if B_pad != B else out


if __name__ == "__main__":
    # Small, deterministic shapes consistent with the module:
    # batch=2, seq=8, d_model=32, output_dim=4.
    B, S, D, O = 2, 8, 32, 4

    key = jax.random.PRNGKey(0)
    kx, kw, kb = jax.random.split(key, 3)

    x = jax.random.normal(kx, (B, S, D), dtype=jnp.float32)
    # Deterministic "init" of the Linear parameters (synthetic, not a checkpoint).
    weight = jax.random.normal(kw, (O, D), dtype=jnp.float32) * 0.05
    bias = jax.random.normal(kb, (O,), dtype=jnp.float32) * 0.01

    # --- no y_range ---------------------------------------------------------
    y = regr_head(x, weight, bias, y_range=None)
    y = jax.block_until_ready(y)
    y_ref = jnp.mean(x, axis=1) @ weight.T + bias
    assert y.shape == (B, O)
    assert jnp.allclose(y, y_ref, atol=1e-5, rtol=1e-5), "mismatch (no y_range)"

    # --- with SigmoidRange ----------------------------------------------------
    lo, hi = 0.0, 5.0
    y2 = regr_head(x, weight, bias, y_range=(lo, hi))
    y2 = jax.block_until_ready(y2)
    y2_ref = jax.nn.sigmoid(y_ref) * (hi - lo) + lo
    assert jnp.allclose(y2, y2_ref, atol=1e-5, rtol=1e-5), "mismatch (y_range)"

    # --- a slightly larger, non-aligned shape to exercise padding/folding ----
    B2, S2, D2, O2 = 6, 23, 64, 3
    kx2, kw2, kb2 = jax.random.split(jax.random.PRNGKey(1), 3)
    x3 = jax.random.normal(kx2, (B2, S2, D2), dtype=jnp.float32)
    w3 = jax.random.normal(kw2, (O2, D2), dtype=jnp.float32) * 0.05
    b3 = jax.random.normal(kb2, (O2,), dtype=jnp.float32) * 0.01
    y3 = jax.block_until_ready(regr_head(x3, w3, b3, y_range=None))
    y3_ref = jnp.mean(x3, axis=1) @ w3.T + b3
    assert jnp.allclose(y3, y3_ref, atol=1e-5, rtol=1e-5), "mismatch (padded case)"

    print("KERNEL_OK")
</pallas_src>

<mosaic_0001>
module attributes {stable_mosaic.version = 11 : i64} {
  func.func @_regr_head_kernel(%arg0: i32, %arg1: i32, %arg2: memref<8x8x128xf32, #tpu.memory_space<vmem>>, %arg3: memref<32x4xf32, #tpu.memory_space<vmem>>, %arg4: memref<1x4xf32, #tpu.memory_space<vmem>>, %arg5: memref<8x4xf32, #tpu.memory_space<vmem>>, %arg6: memref<8x128xf32, #tpu.memory_space<vmem>>) attributes {dimension_semantics = [#tpu.dimension_semantics<parallel>, #tpu.dimension_semantics<arbitrary>], iteration_bounds = array<i64: 1, 1>, scalar_prefetch = 0 : i64, scratch_operands = 1 : i64, tpu.core_type = #tpu.core_type<tc>, window_params = [{transform_indices = @transform_0, window_bounds = array<i64: 8, 8, 128>}, {pipeline_mode = #tpu.pipeline_mode<synchronous>, transform_indices = @transform_1, window_bounds = array<i64: 32, 4>}, {pipeline_mode = #tpu.pipeline_mode<synchronous>, transform_indices = @transform_2, window_bounds = array<i64: 1, 4>}, {transform_indices = @transform_3, window_bounds = array<i64: 8, 4>}]} {
    %c0_i32 = arith.constant 0 : i32
    %0 = arith.cmpi eq, %arg1, %c0_i32 : i32
    %1 = arith.extui %0 : i1 to i32
    %c0_i32_0 = arith.constant 0 : i32
    %2 = arith.cmpi ne, %1, %c0_i32_0 : i32
    scf.if %2 {
      %cst_9 = arith.constant 0.000000e+00 : f32
      %11 = vector.broadcast %cst_9 : f32 to vector<8x128xf32>
      %c0_10 = arith.constant 0 : index
      %c0_11 = arith.constant 0 : index
      %12 = vector.load %arg6[%c0_10, %c0_11] : memref<8x128xf32, #tpu.memory_space<vmem>>, vector<8x128xf32>
      tpu.vector_store %arg6[%c0_10, %c0_11], %11 {strides = array<i32>} : memref<8x128xf32, #tpu.memory_space<vmem>>, vector<8x128xf32>,
    } else {
    }
    %c0 = arith.constant 0 : index
    %c0_1 = arith.constant 0 : index
    %3 = vector.load %arg6[%c0, %c0_1] : memref<8x128xf32, #tpu.memory_space<vmem>>, vector<8x128xf32>
    %c0_2 = arith.constant 0 : index
    %c0_3 = arith.constant 0 : index
    %c0_4 = arith.constant 0 : index
    %4 = vector.load %arg2[%c0_2, %c0_3, %c0_4] : memref<8x8x128xf32, #tpu.memory_space<vmem>>, vector<8x8x128xf32>
    %cst = arith.constant dense<0.000000e+00> : vector<8x128xf32>
    %5 = vector.multi_reduction <add>, %4, %cst [1] : vector<8x8x128xf32> to vector<8x128xf32>
    %6 = arith.addf %3, %5 : vector<8x128xf32>
    %c0_5 = arith.constant 0 : index
    %c0_6 = arith.constant 0 : index
    %7 = vector.load %arg6[%c0_5, %c0_6] : memref<8x128xf32, #tpu.memory_space<vmem>>, vector<8x128xf32>
    tpu.vector_store %arg6[%c0_5, %c0_6], %6 {strides = array<i32>} : memref<8x128xf32, #tpu.memory_space<vmem>>, vector<8x128xf32>,
    %c0_i32_7 = arith.constant 0 : i32
    %8 = arith.cmpi eq, %arg1, %c0_i32_7 : i32
    %9 = arith.extui %8 : i1 to i32
    %c0_i32_8 = arith.constant 0 : i32
    %10 = arith.cmpi ne, %9, %c0_i32_8 : i32
    scf.if %10 {
      %c0_9 = arith.constant 0 : index
      %c0_10 = arith.constant 0 : index
      %11 = vector.load %arg6[%c0_9, %c0_10] : memref<8x128xf32, #tpu.memory_space<vmem>>, vector<8x128xf32>
      %12 = vector.shape_cast %11 : vector<8x128xf32> to vector<8x4x32xf32>
      %cst_11 = arith.constant dense<0.000000e+00> : vector<8x32xf32>
      %13 = vector.multi_reduction <add>, %12, %cst_11 [1] : vector<8x4x32xf32> to vector<8x32xf32>
      %cst_12 = arith.constant 1.250000e-01 : f32
      %14 = vector.broadcast %cst_12 : f32 to vector<8x32xf32>
      %15 = arith.mulf %13, %14 : vector<8x32xf32>
      %c0_13 = arith.constant 0 : index
      %c0_14 = arith.constant 0 : index
      %16 = vector.load %arg3[%c0_13, %c0_14] : memref<32x4xf32, #tpu.memory_space<vmem>>, vector<32x4xf32>
      %cst_15 = arith.constant dense<0.000000e+00> : vector<8x4xf32>
      %17 = tpu.matmul %15, %16, %cst_15 {dimension_numbers = #tpu.dot_dimension_numbers<[1], [0], [0], [1], [0, 0, 1, 1], [], []>} : vector<8x32xf32>, vector<32x4xf32>, vector<8x4xf32> -> vector<8x4xf32>
      %c0_16 = arith.constant 0 : index
      %c0_17 = arith.constant 0 : index
      %18 = vector.load %arg4[%c0_16, %c0_17] : memref<1x4xf32, #tpu.memory_space<vmem>>, vector<1x4xf32>
      %19 = vector.broadcast %18 : vector<1x4xf32> to vector<8x4xf32>
      %20 = arith.addf %17, %19 : vector<8x4xf32>
      %c0_18 = arith.constant 0 : index
      %c0_19 = arith.constant 0 : index
      %21 = vector.load %arg5[%c0_18, %c0_19] : memref<8x4xf32, #tpu.memory_space<vmem>>, vector<8x4xf32>
      tpu.vector_store %arg5[%c0_18, %c0_19], %20 {strides = array<i32>} : memref<8x4xf32, #tpu.memory_space<vmem>>, vector<8x4xf32>,
    } else {
    }
    return
  }
  func.func @transform_0(%arg0: i32, %arg1: i32) -> (i32, i32, i32) {
    %c0_i32 = arith.constant 0 : i32
    %c0_i32_0 = arith.constant 0 : i32
    return %arg0, %arg1, %c0_i32 : i32, i32, i32
  }
  func.func @transform_1(%arg0: i32, %arg1: i32) -> (i32, i32) {
    %c0_i32 = arith.constant 0 : i32
    %c0_i32_0 = arith.constant 0 : i32
    %c0_i32_1 = arith.constant 0 : i32
    return %c0_i32, %c0_i32_0 : i32, i32
  }
  func.func @transform_2(%arg0: i32, %arg1: i32) -> (i32, i32) {
    %c0_i32 = arith.constant 0 : i32
    %c0_i32_0 = arith.constant 0 : i32
    %c0_i32_1 = arith.constant 0 : i32
    return %c0_i32, %c0_i32_0 : i32, i32
  }
  func.func @transform_3(%arg0: i32, %arg1: i32) -> (i32, i32) {
    %c0_i32 = arith.constant 0 : i32
    %c0_i32_0 = arith.constant 0 : i32
    return %arg0, %c0_i32 : i32, i32
  }
}

</mosaic_0001>

<llo_original>
// kernel: tpu_custom_call.1
$region0: #{tpu_custom_call.1}
  #allocation0 [shape = 'u32[]', space=smem, size = 0x4, offset = 0x4, fixed_abs, tag = 'smem constant byte address 0x4 - core index']
  #allocation1 [shape = 'u32[144,128]{1,0:T(1,128)}', space=vmem, size = 0x12000, scoped, tag = 'internal scratch']
  #allocation2 [shape = 'f32[8,128]{1,0:T(8,128)}', space=vmem, size = 0x1000, scoped, tag = 'scratch operand']
  %s0 = inlined_call_operand.hbm [shape: f32[8,8,128], index: 0, kind: input, shape index: {}]
  %s1 = inlined_call_operand.vmem [shape: f32[32,4], index: 1, kind: input, shape index: {}]
  %s2 = inlined_call_operand.vmem [shape: f32[1,4], index: 2, kind: input, shape index: {}]
  %s3 = inlined_call_operand.vmem [shape: f32[8,4], index: 3, kind: output, shape index: {}]
  %s4 = sld [smem:[#allocation0]]
  $region34: #{tpu_custom_call.1} parent=0
    _
  %s6 = ssub.s32 1, %s4
  %s7 = scalar_select 0, %s6, %s4
  $region1: #{tpu_custom_call.1} parent=0
    #allocation3 [shape = 'u8[32768]{0}', space=vmem, size = 0x8000, scoped, tag = 'input window, operand 0, single buffered']
    #allocation4 [shape = 's32[1]{0}', space=sflag, size = 0x4, scoped, tag = 'scoped memory for tpu_custom_call.1']
    %8 = vsyncpa [#allocation4], 0
    // Predicated region
    $region2: #{tpu_custom_call.1} parent=1 // pred_check
      _
    $region3: #{tpu_custom_call.1} parent=1 // pred_check_branch
      %10 = sbr.rel (0) target = $region5
    $region4: #{tpu_custom_call.1} parent=1 // pred_region
      %s12 = ssub.s32 1024, 1024
      %13 = vsyncadd [#allocation4], %s12
      %s14 = sshll.u32 [#allocation3], 4
      %s15 = int_to_ptr.vmem [resolvable:$true] %s14
      %20 = dma.hbm_to_vmem [thread:$0]  %s0, 1024, %s15, [#allocation4], 128, 128, 8
    $region5: #{tpu_custom_call.1} parent=1 // pred_fallthru
      _
    // Predicated region
    $region6: #{tpu_custom_call.1} parent=1 // pred_check
      _
    $region7: #{tpu_custom_call.1} parent=1 // pred_check_branch
      %22 = sbr.rel (0) target = $region9
    $region8: #{tpu_custom_call.1} parent=1 // pred_region
      _
    $region9: #{tpu_custom_call.1} parent=1 // pred_fallthru
      _
    // Predicated region
    $region10: #{tpu_custom_call.1} parent=1 // pred_check
      _
    $region11: #{tpu_custom_call.1} parent=1 // pred_check_branch
      %24 = sbr.rel (0) target = $region13
    $region12: #{tpu_custom_call.1} parent=1 // pred_region
      _
    $region13: #{tpu_custom_call.1} parent=1 // pred_fallthru
      _
    // Predicated region
    $region14: #{tpu_custom_call.1} parent=1 // pred_check
      _
    $region15: #{tpu_custom_call.1} parent=1 // pred_check_branch
      %26 = sbr.rel (0) target = $region17
    $region16: #{tpu_custom_call.1} parent=1 // pred_region
      %27 = dma.done [#allocation4], 1024
    $region17: #{tpu_custom_call.1} parent=1 // pred_fallthru
      _
    %p28 = scmp.eq.s32.totalorder 0, 0
    // Predicated region
    $region18: #{tpu_custom_call.1} parent=1 // pred_check
      %p29 = pneg %p28
    $region19: #{tpu_custom_call.1} parent=1 // pred_check_branch
      %31 = sbr.rel (%p29) target = $region21
    $region20: #{tpu_custom_call.1} parent=1 // pred_region
      %32 = vst [vmem:[#allocation2] sm:$0xff] 0.0
    $region21: #{tpu_custom_call.1} parent=1 // pred_fallthru
      _
    %v33 = vld [vmem:[#allocation2] sm:$0xff]
    %v34 = vld [vmem:[#allocation3] sm:$0xff]
    %v35 = vld [vmem:[#allocation3 + $0x8] sm:$0xff]
    %v36 = vld [vmem:[#allocation3 + $0x10] sm:$0xff]
    %v37 = vld [vmem:[#allocation3 + $0x18] sm:$0xff]
    %v38 = vld [vmem:[#allocation3 + $0x20] sm:$0xff]
    %v39 = vld [vmem:[#allocation3 + $0x28] sm:$0xff]
    %v40 = vld [vmem:[#allocation3 + $0x30] sm:$0xff]
    %v41 = vld [vmem:[#allocation3 + $0x38] sm:$0xff]
    %v42 = vrot.slane %v34, 4
    %v43 = vadd.f32 %v34, %v42
    %v44 = vrot.slane %v43, 2
    %v45 = vadd.f32 %v43, %v44
    %v46 = vrot.slane %v45, 1
    %v47 = vadd.f32 %v45, %v46
    %v48 = vrot.slane %v35, 4
    %v49 = vadd.f32 %v35, %v48
    %v50 = vrot.slane %v49, 2
    %v51 = vadd.f32 %v49, %v50
    %v52 = vrot.slane %v51, 1
    %v53 = vadd.f32 %v51, %v52
    %v54 = vrot.slane %v36, 4
    %v55 = vadd.f32 %v36, %v54
    %v56 = vrot.slane %v55, 2
    %v57 = vadd.f32 %v55, %v56
    %v58 = vrot.slane %v57, 1
    %v59 = vadd.f32 %v57, %v58
    %v60 = vrot.slane %v37, 4
    %v61 = vadd.f32 %v37, %v60
    %v62 = vrot.slane %v61, 2
    %v63 = vadd.f32 %v61, %v62
    %v64 = vrot.slane %v63, 1
    %v65 = vadd.f32 %v63, %v64
    %v66 = vrot.slane %v38, 4
    %v67 = vadd.f32 %v38, %v66
    %v68 = vrot.slane %v67, 2
    %v69 = vadd.f32 %v67, %v68
    %v70 = vrot.slane %v69, 1
    %v71 = vadd.f32 %v69, %v70
    %v72 = vrot.slane %v39, 4
    %v73 = vadd.f32 %v39, %v72
    %v74 = vrot.slane %v73, 2
    %v75 = vadd.f32 %v73, %v74
    %v76 = vrot.slane %v75, 1
    %v77 = vadd.f32 %v75, %v76
    %v78 = vrot.slane %v40, 4
    %v79 = vadd.f32 %v40, %v78
    %v80 = vrot.slane %v79, 2
    %v81 = vadd.f32 %v79, %v80
    %v82 = vrot.slane %v81, 1
    %v83 = vadd.f32 %v81, %v82
    %v84 = vrot.slane %v41, 4
    %v85 = vadd.f32 %v41, %v84
    %v86 = vrot.slane %v85, 2
    %v87 = vadd.f32 %v85, %v86
    %v88 = vrot.slane %v87, 1
    %v89 = vadd.f32 %v87, %v88
    %vm98 = vcmask 1041409
    %v99 = vsel %vm98, %v53, %v47
    %vm100 = vcmask 1042434
    %v101 = vsel %vm100, %v59, %v99
    %vm102 = vcmask 1043459
    %v103 = vsel %vm102, %v65, %v101
    %vm104 = vcmask 1044484
    %v105 = vsel %vm104, %v71, %v103
    %vm106 = vcmask 1045509
    %v107 = vsel %vm106, %v77, %v105
    %vm108 = vcmask 1046534
    %v109 = vsel %vm108, %v83, %v107
    %vm110 = vcmask 1047559
    %v111 = vsel %vm110, %v89, %v109
    %v113 = vadd.f32 %v33, %v111
    %114 = vst [vmem:[#allocation2] sm:$0xff] %v113
    // Predicated region
    $region22: #{tpu_custom_call.1} parent=1 // pred_check
      %p115 = pneg %p28
    $region23: #{tpu_custom_call.1} parent=1 // pred_check_branch
      %117 = sbr.rel (%p115) target = $region25
    $region24: #{tpu_custom_call.1} parent=1 // pred_region
      %v118 = vld [vmem:[#allocation2] sm:$0xff]
      %120 = vrot.lane.b32.xlu0 %v118, 96
      %v121 = vpop.permute.xlu0 %120
      %123 = vrot.lane.b32.xlu0 %v118, 64
      %v124 = vpop.permute.xlu0 %123
      %126 = vrot.lane.b32.xlu0 %v118, 32
      %v127 = vpop.permute.xlu0 %126
      %v129 = vcombine.low %v118, %v124
      %v130 = vcombine.high %v118, %v124
      %v132 = vunpack.c.l.s4 1983009808
      %v133 = vunpack.c.0.s8 %v132
      %v134 = vlaneseq
      %v135 = vshrl.u32 %v134, 7
      %v136 = vsub.s32 %v133, %v135
      %v137 = vrot.slane %v129, %v136
      %v139 = vunpack.c.l.s4 1983009808
      %v140 = vunpack.c.0.s8 %v139
      %v141 = vlaneseq
      %v142 = vshrl.u32 %v141, 7
      %v143 = vsub.s32 %v140, %v142
      %v144 = vrot.slane %v130, %v143
      %v145 = vcombine.low %v121, %v127
      %v146 = vcombine.high %v121, %v127
      %v148 = vunpack.c.l.s4 1983009808
      %v149 = vunpack.c.0.s8 %v148
      %v150 = vlaneseq
      %v151 = vshrl.u32 %v150, 7
      %v152 = vsub.s32 %v149, %v151
      %v153 = vrot.slane %v145, %v152
      %v155 = vunpack.c.l.s4 1983009808
      %v156 = vunpack.c.0.s8 %v155
      %v157 = vlaneseq
      %v158 = vshrl.u32 %v157, 7
      %v159 = vsub.s32 %v156, %v158
      %v160 = vrot.slane %v146, %v159
      %v161 = vcombine.low %v137, %v153
      %v162 = vcombine.high %v137, %v153
      %v164 = vunpack.c.l.s4 1934713408
      %v165 = vunpack.c.0.s8 %v164
      %v166 = vlaneseq
      %v167 = vshrl.u32 %v166, 7
      %v168 = vsub.s32 %v165, %v167
      %v169 = vrot.slane %v161, %v168
      %v171 = vunpack.c.l.s4 1934713408
      %v172 = vunpack.c.0.s8 %v171
      %v173 = vlaneseq
      %v174 = vshrl.u32 %v173, 7
      %v175 = vsub.s32 %v172, %v174
      %v176 = vrot.slane %v162, %v175
      %v177 = vcombine.low %v144, %v160
      %v178 = vcombine.high %v144, %v160
      %v180 = vunpack.c.l.s4 1934713408
      %v181 = vunpack.c.0.s8 %v180
      %v182 = vlaneseq
      %v183 = vshrl.u32 %v182, 7
      %v184 = vsub.s32 %v181, %v183
      %v185 = vrot.slane %v177, %v184
      %v187 = vunpack.c.l.s4 1934713408
      %v188 = vunpack.c.0.s8 %v187
      %v189 = vlaneseq
      %v190 = vshrl.u32 %v189, 7
      %v191 = vsub.s32 %v188, %v190
      %v192 = vrot.slane %v178, %v191
      %v193 = vcombine.high %v169, 0.0
      %v194 = vcombine.high %v176, 0.0
      %v195 = vcombine.high %v185, 0.0
      %v196 = vcombine.high %v192, 0.0
      %vm197 = vcmask 257024
      %v198 = vsel %vm197, %v169, 0.0
      %v199 = vrot.slane %v198, 4
      %v200 = vadd.f32 %v198, %v199
      %v201 = vrot.slane %v200, 2
      %v202 = vadd.f32 %v200, %v201
      %v203 = vrot.slane %v202, 1
      %v204 = vadd.f32 %v202, %v203
      %v205 = vsel %vm197, %v193, 0.0
      %v206 = vrot.slane %v205, 4
      %v207 = vadd.f32 %v205, %v206
      %v208 = vrot.slane %v207, 2
      %v209 = vadd.f32 %v207, %v208
      %v210 = vrot.slane %v209, 1
      %v211 = vadd.f32 %v209, %v210
      %v212 = vsel %vm197, %v176, 0.0
      %v213 = vrot.slane %v212, 4
      %v214 = vadd.f32 %v212, %v213
      %v215 = vrot.slane %v214, 2
      %v216 = vadd.f32 %v214, %v215
      %v217 = vrot.slane %v216, 1
      %v218 = vadd.f32 %v216, %v217
      %v219 = vsel %vm197, %v194, 0.0
      %v220 = vrot.slane %v219, 4
      %v221 = vadd.f32 %v219, %v220
      %v222 = vrot.slane %v221, 2
      %v223 = vadd.f32 %v221, %v222
      %v224 = vrot.slane %v223, 1
      %v225 = vadd.f32 %v223, %v224
      %v226 = vsel %vm197, %v185, 0.0
      %v227 = vrot.slane %v226, 4
      %v228 = vadd.f32 %v226, %v227
      %v229 = vrot.slane %v228, 2
      %v230 = vadd.f32 %v228, %v229
      %v231 = vrot.slane %v230, 1
      %v232 = vadd.f32 %v230, %v231
      %v233 = vsel %vm197, %v195, 0.0
      %v234 = vrot.slane %v233, 4
      %v235 = vadd.f32 %v233, %v234
      %v236 = vrot.slane %v235, 2
      %v237 = vadd.f32 %v235, %v236
      %v238 = vrot.slane %v237, 1
      %v239 = vadd.f32 %v237, %v238
      %v240 = vsel %vm197, %v192, 0.0
      %v241 = vrot.slane %v240, 4
      %v242 = vadd.f32 %v240, %v241
      %v243 = vrot.slane %v242, 2
      %v244 = vadd.f32 %v242, %v243
      %v245 = vrot.slane %v244, 1
      %v246 = vadd.f32 %v244, %v245
      %v247 = vsel %vm197, %v196, 0.0
      %v248 = vrot.slane %v247, 4
      %v249 = vadd.f32 %v247, %v248
      %v250 = vrot.slane %v249, 2
      %v251 = vadd.f32 %v249, %v250
      %v252 = vrot.slane %v251, 1
      %v253 = vadd.f32 %v251, %v252
      %v254 = vmul.f32 %v204, 0.125
      %v255 = vmul.f32 %v211, 0.125
      %v256 = vmul.f32 %v218, 0.125
      %v257 = vmul.f32 %v225, 0.125
      %v258 = vmul.f32 %v232, 0.125
      %v259 = vmul.f32 %v239, 0.125
      %v260 = vmul.f32 %v246, 0.125
      %v261 = vmul.f32 %v253, 0.125
      %v262 = vld [vmem:[%s1] sm:$0xff]
      %v263 = vld [vmem:[%s1 + $0x8] sm:$0xff]
      %v264 = vld [vmem:[%s1 + $0x10] sm:$0xff]
      %v265 = vld [vmem:[%s1 + $0x18] sm:$0xff]
      %v266 = vld [vmem:[%s2] sm:$0x1]
      %v268 = vlaneseq
      %v269 = vshrl.u32 %v268, 7
      %v270 = vsub.s32 0, %v269
      %v271 = vrot.slane %v266, %v270
      %v281 = vsel %vm98, %v255, %v254
      %v282 = vsel %vm100, %v256, %v281
      %v283 = vsel %vm102, %v257, %v282
      %v284 = vsel %vm104, %v258, %v283
      %v285 = vsel %vm106, %v259, %v284
      %v286 = vsel %vm108, %v260, %v285
      %v287 = vsel %vm110, %v261, %v286
      %vm288 = vcmask 261120
      %v289 = vsel %vm288, %v287, 0
      %291 = vmatprep.subr.mxu0 0.0
      %292 = vmatpush1.msra.mxu0 %v262
      %293 = vmatprep.subr.mxu0 0.0
      %294 = vmatpush1.msra.mxu0 %v263
      %295 = vmatprep.subr.mxu0 0.0
      %296 = vmatpush1.msra.mxu0 %v264
      %297 = vmatprep.subr.mxu0 0.0
      %298 = vmatpush1.msra.mxu0 %v265
      %299 = vmatprep.subr.mxu0 0.0
      %300 = vmatpush1.msra.mxu0 0.0
      %301 = vmatprep.subr.mxu0 0.0
      %302 = vmatpush1.msra.mxu0 0.0
      %303 = vmatprep.subr.mxu0 0.0
      %304 = vmatpush1.msra.mxu0 0.0
      %305 = vmatprep.subr.mxu0 0.0
      %306 = vmatpush1.msra.mxu0 0.0
      %307 = vmatprep.subr.mxu0 0.0
      %308 = vmatpush1.msra.mxu0 0.0
      %309 = vmatprep.subr.mxu0 0.0
      %310 = vmatpush1.msra.mxu0 0.0
      %311 = vmatprep.subr.mxu0 0.0
      %312 = vmatpush1.msra.mxu0 0.0
      %313 = vmatprep.subr.mxu0 0.0
      %314 = vmatpush1.msra.mxu0 0.0
      %315 = vmatprep.subr.mxu0 0.0
      %316 = vmatpush1.msra.mxu0 0.0
      %317 = vmatprep.subr.mxu0 0.0
      %318 = vmatpush1.msra.mxu0 0.0
      %319 = vmatprep.subr.mxu0 0.0
      %320 = vmatpush1.msra.mxu0 0.0
      %321 = vmatprep.subr.mxu0 0.0
      %322 = vmatpush1.msra.mxu0 0.0
      %323 = vmatprep.subr.mxu0 0.0
      %324 = vmatpush1.msra.mxu0 0.0
      %325 = vmatprep.subr.mxu0 0.0
      %326 = vmatpush1.msra.mxu0 0.0
      %327 = vmatprep.subr.mxu0 0.0
      %328 = vmatpush1.msra.mxu0 0.0
      %329 = vmatprep.subr.mxu0 0.0
      %330 = vmatpush1.msra.mxu0 0.0
      %331 = vmatprep.subr.mxu0 0.0
      %332 = vmatpush1.msra.mxu0 0.0
      %333 = vmatprep.subr.mxu0 0.0
      %334 = vmatpush1.msra.mxu0 0.0
      %335 = vmatprep.subr.mxu0 0.0
      %336 = vmatpush1.msra.mxu0 0.0
      %337 = vmatprep.subr.mxu0 0.0
      %338 = vmatpush1.msra.mxu0 0.0
      %339 = vmatprep.subr.mxu0 0.0
      %340 = vmatpush1.msra.mxu0 0.0
      %341 = vmatprep.subr.mxu0 0.0
      %342 = vmatpush1.msra.mxu0 0.0
      %343 = vmatprep.subr.mxu0 0.0
      %344 = vmatpush1.msra.mxu0 0.0
      %345 = vmatprep.subr.mxu0 0.0
      %346 = vmatpush1.msra.mxu0 0.0
      %347 = vmatprep.subr.mxu0 0.0
      %348 = vmatpush1.msra.mxu0 0.0
      %349 = vmatprep.subr.mxu0 0.0
      %350 = vmatpush1.msra.mxu0 0.0
      %351 = vmatprep.subr.mxu0 0.0
      %352 = vmatpush1.msra.mxu0 0.0
      %353 = vmatprep.subr.mxu0 0.0
      %354 = vmatpush1.msra.mxu0 0.0
      %355 = vmatprep.mubr.f32.mxu0 0.0
      %356 = vmatmul.mubr.f32.gmra.mrb[0].mxu0 %v289
      %v357 = vpop.f32.mrb[0].mxu0
      %v358 = vadd.f32 %v271, %v357
      %v359 = vpop.f32.mrb[0].mxu0
      %360 = vdwg.mxu0
      %vm361 = vcmask 31744
      %362 = vst.msk [vmem:[%s3] sm:$0xff] %vm361, %v358
    $region25: #{tpu_custom_call.1} parent=1 // pred_fallthru
      _
    // Predicated region
    $region26: #{tpu_custom_call.1} parent=1 // pred_check
      _
    $region27: #{tpu_custom_call.1} parent=1 // pred_check_branch
      %364 = sbr.rel (0) target = $region29
    $region28: #{tpu_custom_call.1} parent=1 // pred_region
      _
    $region29: #{tpu_custom_call.1} parent=1 // pred_fallthru
      _
    // Predicated region
    $region30: #{tpu_custom_call.1} parent=1 // pred_check
      _
    $region31: #{tpu_custom_call.1} parent=1 // pred_check_branch
      %366 = sbr.rel (0) target = $region33
    $region32: #{tpu_custom_call.1} parent=1 // pred_region
      _
    $region33: #{tpu_custom_call.1} parent=1 // pred_fallthru
      _
    %367 = vsyncpa [#allocation4], 1

</llo_original>
